<compile_context>
chip_gen: v7x
topology: tpu7x:2x2x1
jax: 0.10.0
libtpu: 0.0.40
codegen_flags: <defaults>
</compile_context>

<pallas_src>
import functools

import jax
import jax.numpy as jnp
from jax.experimental import pallas as pl
from jax.experimental.pallas import tpu as pltpu


def _round_up(x, m):
    return ((x + m - 1) // m) * m


# ----------------------------- Pallas kernel --------------------------------
def mlp_base_kernel(x_ref, w1_ref, w2_ref, w3_ref, b_ref, out_ref, *,
                    actor_width, hidden2):
    """Fused actor+critic trunk (3 MXU matmuls, lane-dense widths).

    Weight packing (done once in pack_params):
      w1 = [aw1 | cw1]                      (D_in, 2H)
      w2 = blockdiag(aw2, cw2)              (2H,  2H)
      w3 = [[aw3 , 0 , 0],
            [ 0  ,clw, 0]]                  (2H,  OUT_PAD); column `actor_width`
                                            holds the value head.
      b  = rows [b1 | b2 | b3] padded to    (3,   OUT_PAD) f32.
    tanh is applied to every lane except the value column.
    """
    x = x_ref[...].astype(jnp.bfloat16)                              # (BT, D_in)
    bias = b_ref[...]                                                # (3, OUT_PAD) f32
    b1 = bias[0:1, :hidden2]
    b2 = bias[1:2, :hidden2]
    b3 = bias[2:3, :]

    h = jnp.tanh(jnp.dot(x, w1_ref[...],
                         preferred_element_type=jnp.float32) + b1)
    h = h.astype(jnp.bfloat16)                                       # (BT, 2H)
    h = jnp.tanh(jnp.dot(h, w2_ref[...],
                         preferred_element_type=jnp.float32) + b2)
    h = h.astype(jnp.bfloat16)                                       # (BT, 2H)
    z = jnp.dot(h, w3_ref[...],
                preferred_element_type=jnp.float32) + b3             # (BT, OUT_PAD) f32

    lane = jax.lax.broadcasted_iota(jnp.int32, z.shape, 1)
    out_ref[...] = jnp.where(lane < actor_width, jnp.tanh(z), z)


# ----------------------------- wrapper ---------------------------------------
def mlp_base_forward(inputs, rnn_hxs, masks, packed_params):
    """MLPBase.forward for recurrent=False.

    inputs : (B, 32, W, W) float32 (NCHW, flattened exactly like torch .view(B,-1))
    Returns (value (B, 1), hidden_actor (B, W*W*19), rnn_hxs).
    """
    # TODO(synk): recurrent=True (GRUCell) path not implemented; this covers the
    # default recurrent=False forward (masks unused, rnn_hxs passed through).
    w1, w2, w3, b, actor_width = packed_params
    B = inputs.shape[0]
    x = inputs.reshape(B, -1)                     # f32 view; bf16 cast is in-kernel
    d_in = x.shape[1]
    h2 = w2.shape[0]
    out_pad = w3.shape[1]

    # Sublane-pad the batch and pick a batch tile (multiple of 8, <= 128).
    b_pad = _round_up(max(B, 1), 8)
    bt = min(b_pad, 128)
    b_pad = _round_up(b_pad, bt)
    if b_pad != B:
        x = jnp.pad(x, ((0, b_pad - B), (0, 0)))
    n_tiles = b_pad // bt

    flops = 2 * b_pad * (d_in * h2 + h2 * h2 + h2 * out_pad)
    transcendentals = b_pad * (2 * h2 + actor_width)
    bytes_accessed = (b_pad * d_in * 4                      # x (f32)
                      + (w1.size + w2.size + w3.size) * 2   # bf16 weights
                      + b.size * 4                          # bias slab (f32)
                      + b_pad * out_pad * 4)                # output (f32)

    out = pl.pallas_call(
        functools.partial(mlp_base_kernel, actor_width=actor_width, hidden2=h2),
        out_shape=jax.ShapeDtypeStruct((b_pad, out_pad), jnp.float32),
        grid=(n_tiles,),
        in_specs=[
            pl.BlockSpec((bt, d_in), lambda i: (i, 0)),      # x streams per tile
            pl.BlockSpec((d_in, h2), lambda i: (0, 0)),      # weights resident
            pl.BlockSpec((h2, h2), lambda i: (0, 0)),
            pl.BlockSpec((h2, out_pad), lambda i: (0, 0)),
            pl.BlockSpec((3, out_pad), lambda i: (0, 0)),    # fused bias slab
        ],
        out_specs=pl.BlockSpec((bt, out_pad), lambda i: (i, 0)),
        compiler_params=pltpu.CompilerParams(
            dimension_semantics=("parallel",)),
        cost_estimate=pl.CostEstimate(
            flops=flops, transcendentals=transcendentals,
            bytes_accessed=bytes_accessed),
    )(x, w1, w2, w3, b)

    hidden_actor = out[:B, :actor_width]
    value = out[:B, actor_width:actor_width + 1]
    return value, hidden_actor, rnn_hxs


# ------------------------ deterministic parameter init -----------------------
def init_normc(key, out_features, in_features):
    """Reproduce init_normc_: normal(0,1), normalize each output row, bias=0.
    Returns weight transposed to (in, out) for x @ W."""
    w = jax.random.normal(key, (out_features, in_features), dtype=jnp.float32)
    w = w / jnp.sqrt(jnp.sum(w * w, axis=1, keepdims=True))
    return w.T, jnp.zeros((1, out_features), dtype=jnp.float32)


def make_params(key, num_inputs, hidden_size, map_width):
    actor_out = map_width * map_width * 19
    keys = jax.random.split(key, 6)
    aw1, ab1 = init_normc(keys[0], hidden_size, num_inputs)
    aw2, ab2 = init_normc(keys[1], hidden_size, hidden_size)
    aw3, ab3 = init_normc(keys[2], actor_out, hidden_size)
    cw1, cb1 = init_normc(keys[3], hidden_size, num_inputs)
    cw2, cb2 = init_normc(keys[4], hidden_size, hidden_size)
    clw, clb = init_normc(keys[5], 1, hidden_size)
    return (aw1, ab1, aw2, ab2, aw3, ab3, cw1, cb1, cw2, cb2, clw, clb)


def pack_params(params):
    """One-time fusion of actor+critic weights into lane-dense bf16 blocks and
    a single padded f32 bias slab."""
    (aw1, ab1, aw2, ab2, aw3, ab3, cw1, cb1, cw2, cb2, clw, clb) = params
    hid = aw1.shape[1]
    a_out = aw3.shape[1]
    hid2 = 2 * hid
    out_pad = _round_up(max(a_out + 1, hid2), 128)   # lane-dense, fits bias rows

    w1 = jnp.concatenate([aw1, cw1], axis=1)                         # (D_in, 2H)

    w2 = jnp.zeros((hid2, hid2), jnp.float32)
    w2 = w2.at[:hid, :hid].set(aw2).at[hid:, hid:].set(cw2)          # block-diag

    w3 = jnp.zeros((hid2, out_pad), jnp.float32)
    w3 = w3.at[:hid, :a_out].set(aw3).at[hid:, a_out:a_out + 1].set(clw)

    b = jnp.zeros((3, out_pad), jnp.float32)
    b = b.at[0, :hid].set(ab1[0]).at[0, hid:hid2].set(cb1[0])
    b = b.at[1, :hid].set(ab2[0]).at[1, hid:hid2].set(cb2[0])
    b = b.at[2, :a_out].set(ab3[0]).at[2, a_out:a_out + 1].set(clb[0])

    return (w1.astype(jnp.bfloat16),
            w2.astype(jnp.bfloat16),
            w3.astype(jnp.bfloat16),
            b, a_out)


# ------------------------------ pure-JAX reference ---------------------------
def mlp_base_reference(inputs, params):
    (aw1, ab1, aw2, ab2, aw3, ab3, cw1, cb1, cw2, cb2, clw, clb) = params
    x = inputs.reshape(inputs.shape[0], -1).astype(jnp.float32)
    a = jnp.tanh(x @ aw1 + ab1)
    a = jnp.tanh(a @ aw2 + ab2)
    actor = jnp.tanh(a @ aw3 + ab3)
    c = jnp.tanh(x @ cw1 + cb1)
    c = jnp.tanh(c @ cw2 + cb2)
    value = c @ clw + clb
    return value, actor


# ----------------------------------- main ------------------------------------
if __name__ == "__main__":
    # Small, module-consistent shapes: map_width=4 -> num_inputs = 4*4*32 = 512,
    # actor output = 4*4*19 = 304 (padded to 384 inside), hidden=64, batch=2
    # (padded to 8 sublanes inside).
    B, MAP_W, HIDDEN = 2, 4, 64
    NUM_INPUTS = MAP_W * MAP_W * 32
    ACTOR_OUT = MAP_W * MAP_W * 19

    key = jax.random.PRNGKey(0)
    k_in, k_par = jax.random.split(key)

    inputs = jax.random.normal(k_in, (B, 32, MAP_W, MAP_W), dtype=jnp.float32)
    rnn_hxs = jnp.zeros((B, 1), dtype=jnp.float32)   # recurrent=False -> size 1
    masks = jnp.ones((B, 1), dtype=jnp.float32)

    raw_params = make_params(k_par, NUM_INPUTS, HIDDEN, MAP_W)
    packed = pack_params(raw_params)                 # one-time packing / bf16

    value, hidden_actor, rnn_hxs_out = mlp_base_forward(
        inputs, rnn_hxs, masks, packed)
    jax.block_until_ready((value, hidden_actor, rnn_hxs_out))

    assert value.shape == (B, 1)
    assert hidden_actor.shape == (B, ACTOR_OUT)
    assert rnn_hxs_out.shape == rnn_hxs.shape

    # Sanity check against the f32 reference (bf16 weights -> loose tolerance).
    ref_value, ref_actor = mlp_base_reference(inputs, raw_params)
    assert float(jnp.max(jnp.abs(value - ref_value))) < 1e-1
    assert float(jnp.max(jnp.abs(hidden_actor - ref_actor))) < 1e-1

    print("KERNEL_OK")
</pallas_src>

<mosaic_0001>
module attributes {stable_mosaic.version = 11 : i64} {
  func.func @mlp_base_kernel(%arg0: i32, %arg1: memref<8x512xf32, #tpu.memory_space<vmem>>, %arg2: memref<512x128xbf16, #tpu.memory_space<vmem>>, %arg3: memref<128x128xbf16, #tpu.memory_space<vmem>>, %arg4: memref<128x384xbf16, #tpu.memory_space<vmem>>, %arg5: memref<3x384xf32, #tpu.memory_space<vmem>>, %arg6: memref<8x384xf32, #tpu.memory_space<vmem>>) attributes {dimension_semantics = [#tpu.dimension_semantics<parallel>], iteration_bounds = array<i64: 1>, scalar_prefetch = 0 : i64, scratch_operands = 0 : i64, tpu.core_type = #tpu.core_type<tc>, window_params = [{transform_indices = @transform_0, window_bounds = array<i64: 8, 512>}, {pipeline_mode = #tpu.pipeline_mode<synchronous>, transform_indices = @transform_1, window_bounds = array<i64: 512, 128>}, {pipeline_mode = #tpu.pipeline_mode<synchronous>, transform_indices = @transform_2, window_bounds = array<i64: 128, 128>}, {pipeline_mode = #tpu.pipeline_mode<synchronous>, transform_indices = @transform_3, window_bounds = array<i64: 128, 384>}, {pipeline_mode = #tpu.pipeline_mode<synchronous>, transform_indices = @transform_4, window_bounds = array<i64: 3, 384>}, {transform_indices = @transform_5, window_bounds = array<i64: 8, 384>}]} {
    %c0 = arith.constant 0 : index
    %c0_0 = arith.constant 0 : index
    %0 = vector.load %arg1[%c0, %c0_0] : memref<8x512xf32, #tpu.memory_space<vmem>>, vector<8x512xf32>
    %1 = arith.truncf %0 : vector<8x512xf32> to vector<8x512xbf16>
    %c0_1 = arith.constant 0 : index
    %c0_2 = arith.constant 0 : index
    %2 = vector.load %arg5[%c0_1, %c0_2] : memref<3x384xf32, #tpu.memory_space<vmem>>, vector<3x384xf32>
    %3 = vector.extract_strided_slice %2 {offsets = [0, 0], sizes = [1, 128], strides = [1, 1]} : vector<3x384xf32> to vector<1x128xf32>
    %4 = vector.extract_strided_slice %2 {offsets = [1, 0], sizes = [1, 128], strides = [1, 1]} : vector<3x384xf32> to vector<1x128xf32>
    %5 = vector.extract_strided_slice %2 {offsets = [2, 0], sizes = [1, 384], strides = [1, 1]} : vector<3x384xf32> to vector<1x384xf32>
    %c0_3 = arith.constant 0 : index
    %c0_4 = arith.constant 0 : index
    %6 = vector.load %arg2[%c0_3, %c0_4] : memref<512x128xbf16, #tpu.memory_space<vmem>>, vector<512x128xbf16>
    %cst = arith.constant dense<0.000000e+00> : vector<8x128xf32>
    %7 = tpu.matmul %1, %6, %cst {dimension_numbers = #tpu.dot_dimension_numbers<[1], [0], [0], [1], [0, 0, 1, 1], [], []>} : vector<8x512xbf16>, vector<512x128xbf16>, vector<8x128xf32> -> vector<8x128xf32>
    %8 = vector.broadcast %3 : vector<1x128xf32> to vector<8x128xf32>
    %9 = arith.addf %7, %8 : vector<8x128xf32>
    %10 = math.tanh %9 : vector<8x128xf32>
    %11 = arith.truncf %10 : vector<8x128xf32> to vector<8x128xbf16>
    %c0_5 = arith.constant 0 : index
    %c0_6 = arith.constant 0 : index
    %12 = vector.load %arg3[%c0_5, %c0_6] : memref<128x128xbf16, #tpu.memory_space<vmem>>, vector<128x128xbf16>
    %cst_7 = arith.constant dense<0.000000e+00> : vector<8x128xf32>
    %13 = tpu.matmul %11, %12, %cst_7 {dimension_numbers = #tpu.dot_dimension_numbers<[1], [0], [0], [1], [0, 0, 1, 1], [], []>} : vector<8x128xbf16>, vector<128x128xbf16>, vector<8x128xf32> -> vector<8x128xf32>
    %14 = vector.broadcast %4 : vector<1x128xf32> to vector<8x128xf32>
    %15 = arith.addf %13, %14 : vector<8x128xf32>
    %16 = math.tanh %15 : vector<8x128xf32>
    %17 = arith.truncf %16 : vector<8x128xf32> to vector<8x128xbf16>
    %c0_8 = arith.constant 0 : index
    %c0_9 = arith.constant 0 : index
    %18 = vector.load %arg4[%c0_8, %c0_9] : memref<128x384xbf16, #tpu.memory_space<vmem>>, vector<128x384xbf16>
    %cst_10 = arith.constant dense<0.000000e+00> : vector<8x384xf32>
    %19 = tpu.matmul %17, %18, %cst_10 {dimension_numbers = #tpu.dot_dimension_numbers<[1], [0], [0], [1], [0, 0, 1, 1], [], []>} : vector<8x128xbf16>, vector<128x384xbf16>, vector<8x384xf32> -> vector<8x384xf32>
    %20 = vector.broadcast %5 : vector<1x384xf32> to vector<8x384xf32>
    %21 = arith.addf %19, %20 : vector<8x384xf32>
    %22 = tpu.iota {dimensions = array<i32: 1>} : vector<8x384xi32>
    %c304_i32 = arith.constant 304 : i32
    %23 = vector.broadcast %c304_i32 : i32 to vector<8x384xi32>
    %24 = arith.cmpi slt, %22, %23 : vector<8x384xi32>
    %25 = math.tanh %21 : vector<8x384xf32>
    %26 = arith.select %24, %25, %21 : vector<8x384xi1>, vector<8x384xf32>
    %c0_11 = arith.constant 0 : index
    %c0_12 = arith.constant 0 : index
    %27 = vector.load %arg6[%c0_11, %c0_12] : memref<8x384xf32, #tpu.memory_space<vmem>>, vector<8x384xf32>
    tpu.vector_store %arg6[%c0_11, %c0_12], %26 {strides = array<i32>} : memref<8x384xf32, #tpu.memory_space<vmem>>, vector<8x384xf32>,
    return
  }
  func.func @transform_0(%arg0: i32) -> (i32, i32) {
    %c0_i32 = arith.constant 0 : i32
    %c0_i32_0 = arith.constant 0 : i32
    return %arg0, %c0_i32 : i32, i32
  }
  func.func @transform_1(%arg0: i32) -> (i32, i32) {
    %c0_i32 = arith.constant 0 : i32
    %c0_i32_0 = arith.constant 0 : i32
    %c0_i32_1 = arith.constant 0 : i32
    return %c0_i32, %c0_i32_0 : i32, i32
  }
  func.func @transform_2(%arg0: i32) -> (i32, i32) {
    %c0_i32 = arith.constant 0 : i32
    %c0_i32_0 = arith.constant 0 : i32
    %c0_i32_1 = arith.constant 0 : i32
    return %c0_i32, %c0_i32_0 : i32, i32
  }
  func.func @transform_3(%arg0: i32) -> (i32, i32) {
    %c0_i32 = arith.constant 0 : i32
    %c0_i32_0 = arith.constant 0 : i32
    %c0_i32_1 = arith.constant 0 : i32
    return %c0_i32, %c0_i32_0 : i32, i32
  }
  func.func @transform_4(%arg0: i32) -> (i32, i32) {
    %c0_i32 = arith.constant 0 : i32
    %c0_i32_0 = arith.constant 0 : i32
    %c0_i32_1 = arith.constant 0 : i32
    return %c0_i32, %c0_i32_0 : i32, i32
  }
  func.func @transform_5(%arg0: i32) -> (i32, i32) {
    %c0_i32 = arith.constant 0 : i32
    %c0_i32_0 = arith.constant 0 : i32
    return %arg0, %c0_i32 : i32, i32
  }
}

</mosaic_0001>

<llo_original>
// kernel: tpu_custom_call.1
$region0: #{tpu_custom_call.1}
  #allocation0 [shape = 'u32[]', space=smem, size = 0x4, offset = 0x4, fixed_abs, tag = 'smem constant byte address 0x4 - core index']
  #allocation1 [shape = 'u32[144,128]{1,0:T(1,128)}', space=vmem, size = 0x12000, scoped, tag = 'internal scratch']
  %s0 = inlined_call_operand.hbm [shape: f32[8,512], index: 0, kind: input, shape index: {}]
  %s1 = inlined_call_operand.hbm [shape: bf16[512,128], index: 1, kind: input, shape index: {}]
  %s2 = inlined_call_operand.hbm [shape: bf16[128,128], index: 2, kind: input, shape index: {}]
  %s3 = inlined_call_operand.hbm [shape: bf16[128,384], index: 3, kind: input, shape index: {}]
  %s4 = inlined_call_operand.vmem [shape: f32[3,384], index: 4, kind: input, shape index: {}]
  %s5 = inlined_call_operand.hbm [shape: f32[8,384], index: 5, kind: output, shape index: {}]
  %s6 = sld [smem:[#allocation0]]
  $region46: #{tpu_custom_call.1} parent=0
    _
  %s8 = ssub.s32 1, %s6
  %s9 = scalar_select 0, %s8, %s6
  $region1: #{tpu_custom_call.1} parent=0
    #allocation2 [shape = 'u8[16384]{0}', space=vmem, size = 0x4000, scoped, tag = 'input window, operand 0, single buffered']
    #allocation3 [shape = 's32[1]{0}', space=sflag, size = 0x4, scoped, tag = 'scoped memory for tpu_custom_call.1']
    #allocation4 [shape = 's32[1]{0}', space=sflag, size = 0x4, scoped, tag = 'scoped memory for tpu_custom_call.1']
    #allocation5 [shape = 'u8[131072]{0}', space=vmem, size = 0x20000, scoped, tag = 'input window, operand 1, single buffered']
    #allocation6 [shape = 's32[1]{0}', space=sflag, size = 0x4, scoped, tag = 'scoped memory for tpu_custom_call.1']
    #allocation7 [shape = 'u8[32768]{0}', space=vmem, size = 0x8000, scoped, tag = 'input window, operand 2, single buffered']
    #allocation8 [shape = 'u8[98304]{0}', space=vmem, size = 0x18000, scoped, tag = 'input window, operand 3, single buffered']
    #allocation9 [shape = 's32[1]{0}', space=sflag, size = 0x4, scoped, tag = 'scoped memory for tpu_custom_call.1']
    #allocation10 [shape = 'u8[12288]{0}', space=vmem, size = 0x3000, scoped, tag = 'output window, operand 0, single buffered']
    %10 = vsyncpa [#allocation3], 0
    %11 = vsyncpa [#allocation6], 0
    %12 = vsyncpa [#allocation9], 0
    %13 = vsyncpa [#allocation4], 0
    // Predicated region
    $region2: #{tpu_custom_call.1} parent=1 // pred_check
      _
    $region3: #{tpu_custom_call.1} parent=1 // pred_check_branch
      %15 = sbr.rel (0) target = $region5
    $region4: #{tpu_custom_call.1} parent=1 // pred_region
      %s17 = ssub.s32 512, 512
      %18 = vsyncadd [#allocation3], %s17
      %s20 = sshll.u32 [#allocation2], 4
      %s21 = int_to_ptr.vmem [resolvable:$true] %s20
      %23 = dma.hbm_to_vmem [thread:$0]  %s0, 512, %s21, [#allocation3]
    $region5: #{tpu_custom_call.1} parent=1 // pred_fallthru
      _
    // Predicated region
    $region6: #{tpu_custom_call.1} parent=1 // pred_check
      _
    $region7: #{tpu_custom_call.1} parent=1 // pred_check_branch
      %25 = sbr.rel (0) target = $region9
    $region8: #{tpu_custom_call.1} parent=1 // pred_region
      %s27 = ssub.s32 4096, 4096
      %28 = vsyncadd [#allocation6], %s27
      %s29 = sshll.u32 [#allocation5], 4
      %s30 = int_to_ptr.vmem [resolvable:$true] %s29
      %35 = dma.hbm_to_vmem [thread:$0]  %s1, 4096, %s30, [#allocation6], 64, 64, 4
    $region9: #{tpu_custom_call.1} parent=1 // pred_fallthru
      _
    // Predicated region
    $region10: #{tpu_custom_call.1} parent=1 // pred_check
      _
    $region11: #{tpu_custom_call.1} parent=1 // pred_check_branch
      %37 = sbr.rel (0) target = $region13
    $region12: #{tpu_custom_call.1} parent=1 // pred_region
      %s39 = ssub.s32 1024, 1024
      %40 = vsyncadd [#allocation6], %s39
      %s41 = sshll.u32 [#allocation7], 4
      %s42 = int_to_ptr.vmem [resolvable:$true] %s41
      %47 = dma.hbm_to_vmem [thread:$0]  %s2, 1024, %s42, [#allocation6], 64, 64, 4
    $region13: #{tpu_custom_call.1} parent=1 // pred_fallthru
      _
    // Predicated region
    $region14: #{tpu_custom_call.1} parent=1 // pred_check
      _
    $region15: #{tpu_custom_call.1} parent=1 // pred_check_branch
      %49 = sbr.rel (0) target = $region17
    $region16: #{tpu_custom_call.1} parent=1 // pred_region
      %s51 = ssub.s32 3072, 3072
      %52 = vsyncadd [#allocation9], %s51
      %s53 = sshll.u32 [#allocation8], 4
      %s54 = int_to_ptr.vmem [resolvable:$true] %s53
      %59 = dma.hbm_to_vmem [thread:$0]  %s3, 3072, %s54, [#allocation9], 192, 192, 12
    $region17: #{tpu_custom_call.1} parent=1 // pred_fallthru
      _
    // Predicated region
    $region18: #{tpu_custom_call.1} parent=1 // pred_check
      _
    $region19: #{tpu_custom_call.1} parent=1 // pred_check_branch
      %61 = sbr.rel (0) target = $region21
    $region20: #{tpu_custom_call.1} parent=1 // pred_region
      _
    $region21: #{tpu_custom_call.1} parent=1 // pred_fallthru
      _
    // Predicated region
    $region22: #{tpu_custom_call.1} parent=1 // pred_check
      _
    $region23: #{tpu_custom_call.1} parent=1 // pred_check_branch
      %63 = sbr.rel (0) target = $region25
    $region24: #{tpu_custom_call.1} parent=1 // pred_region
      %64 = dma.done [#allocation3], 512
    $region25: #{tpu_custom_call.1} parent=1 // pred_fallthru
      _
    // Predicated region
    $region26: #{tpu_custom_call.1} parent=1 // pred_check
      _
    $region27: #{tpu_custom_call.1} parent=1 // pred_check_branch
      %66 = sbr.rel (0) target = $region29
    $region28: #{tpu_custom_call.1} parent=1 // pred_region
      %67 = dma.done [#allocation6], 4096
    $region29: #{tpu_custom_call.1} parent=1 // pred_fallthru
      _
    // Predicated region
    $region30: #{tpu_custom_call.1} parent=1 // pred_check
      _
    $region31: #{tpu_custom_call.1} parent=1 // pred_check_branch
      %69 = sbr.rel (0) target = $region33
    $region32: #{tpu_custom_call.1} parent=1 // pred_region
      %70 = dma.done [#allocation6], 1024
    $region33: #{tpu_custom_call.1} parent=1 // pred_fallthru
      _
    // Predicated region
    $region34: #{tpu_custom_call.1} parent=1 // pred_check
      _
    $region35: #{tpu_custom_call.1} parent=1 // pred_check_branch
      %72 = sbr.rel (0) target = $region37
    $region36: #{tpu_custom_call.1} parent=1 // pred_region
      %73 = dma.done [#allocation9], 3072
    $region37: #{tpu_custom_call.1} parent=1 // pred_fallthru
      _
    %v75 = vld [vmem:[#allocation2] sm:$0xff]
    %v76 = vld [vmem:[#allocation2 + $0x8] sm:$0xff]
    %v77 = vld [vmem:[#allocation2 + $0x10] sm:$0xff]
    %v78 = vld [vmem:[#allocation2 + $0x18] sm:$0xff]
    %v79 = vpack.c.bf16 %v75, %v75
    %v80 = vpack.c.bf16 %v76, %v76
    %v81 = vpack.c.bf16 %v77, %v77
    %v82 = vpack.c.bf16 %v78, %v78
    %v83 = vld [vmem:[%s4] sm:$0x77]
    %v84 = vld [vmem:[%s4 + $0x8] sm:$0x7]
    %v85 = vld [vmem:[#allocation5] sm:$0xf]
    %v86 = vld [vmem:[#allocation5 + $0x4] sm:$0xf]
    %v87 = vld [vmem:[#allocation5 + $0x8] sm:$0xf]
    %v88 = vld [vmem:[#allocation5 + $0xc] sm:$0xf]
    %v89 = vld [vmem:[#allocation5 + $0x10] sm:$0xf]
    %v90 = vld [vmem:[#allocation5 + $0x14] sm:$0xf]
    %v91 = vld [vmem:[#allocation5 + $0x18] sm:$0xf]
    %v92 = vld [vmem:[#allocation5 + $0x1c] sm:$0xf]
    %v93 = vld [vmem:[#allocation5 + $0x20] sm:$0xf]
    %v94 = vld [vmem:[#allocation5 + $0x24] sm:$0xf]
    %v95 = vld [vmem:[#allocation5 + $0x28] sm:$0xf]
    %v96 = vld [vmem:[#allocation5 + $0x2c] sm:$0xf]
    %v97 = vld [vmem:[#allocation5 + $0x30] sm:$0xf]
    %v98 = vld [vmem:[#allocation5 + $0x34] sm:$0xf]
    %v99 = vld [vmem:[#allocation5 + $0x38] sm:$0xf]
    %v100 = vld [vmem:[#allocation5 + $0x3c] sm:$0xf]
    %v101 = vld [vmem:[#allocation5 + $0x40] sm:$0xf]
    %v102 = vld [vmem:[#allocation5 + $0x44] sm:$0xf]
    %v103 = vld [vmem:[#allocation5 + $0x48] sm:$0xf]
    %v104 = vld [vmem:[#allocation5 + $0x4c] sm:$0xf]
    %v105 = vld [vmem:[#allocation5 + $0x50] sm:$0xf]
    %v106 = vld [vmem:[#allocation5 + $0x54] sm:$0xf]
    %v107 = vld [vmem:[#allocation5 + $0x58] sm:$0xf]
    %v108 = vld [vmem:[#allocation5 + $0x5c] sm:$0xf]
    %v109 = vld [vmem:[#allocation5 + $0x60] sm:$0xf]
    %v110 = vld [vmem:[#allocation5 + $0x64] sm:$0xf]
    %v111 = vld [vmem:[#allocation5 + $0x68] sm:$0xf]
    %v112 = vld [vmem:[#allocation5 + $0x6c] sm:$0xf]
    %v113 = vld [vmem:[#allocation5 + $0x70] sm:$0xf]
    %v114 = vld [vmem:[#allocation5 + $0x74] sm:$0xf]
    %v115 = vld [vmem:[#allocation5 + $0x78] sm:$0xf]
    %v116 = vld [vmem:[#allocation5 + $0x7c] sm:$0xf]
    %v117 = vld [vmem:[#allocation5 + $0x80] sm:$0xf]
    %v118 = vld [vmem:[#allocation5 + $0x84] sm:$0xf]
    %v119 = vld [vmem:[#allocation5 + $0x88] sm:$0xf]
    %v120 = vld [vmem:[#allocation5 + $0x8c] sm:$0xf]
    %v121 = vld [vmem:[#allocation5 + $0x90] sm:$0xf]
    %v122 = vld [vmem:[#allocation5 + $0x94] sm:$0xf]
    %v123 = vld [vmem:[#allocation5 + $0x98] sm:$0xf]
    %v124 = vld [vmem:[#allocation5 + $0x9c] sm:$0xf]
    %v125 = vld [vmem:[#allocation5 + $0xa0] sm:$0xf]
    %v126 = vld [vmem:[#allocation5 + $0xa4] sm:$0xf]
    %v127 = vld [vmem:[#allocation5 + $0xa8] sm:$0xf]
    %v128 = vld [vmem:[#allocation5 + $0xac] sm:$0xf]
    %v129 = vld [vmem:[#allocation5 + $0xb0] sm:$0xf]
    %v130 = vld [vmem:[#allocation5 + $0xb4] sm:$0xf]
    %v131 = vld [vmem:[#allocation5 + $0xb8] sm:$0xf]
    %v132 = vld [vmem:[#allocation5 + $0xbc] sm:$0xf]
    %v133 = vld [vmem:[#allocation5 + $0xc0] sm:$0xf]
    %v134 = vld [vmem:[#allocation5 + $0xc4] sm:$0xf]
    %v135 = vld [vmem:[#allocation5 + $0xc8] sm:$0xf]
    %v136 = vld [vmem:[#allocation5 + $0xcc] sm:$0xf]
    %v137 = vld [vmem:[#allocation5 + $0xd0] sm:$0xf]
    %v138 = vld [vmem:[#allocation5 + $0xd4] sm:$0xf]
    %v139 = vld [vmem:[#allocation5 + $0xd8] sm:$0xf]
    %v140 = vld [vmem:[#allocation5 + $0xdc] sm:$0xf]
    %v141 = vld [vmem:[#allocation5 + $0xe0] sm:$0xf]
    %v142 = vld [vmem:[#allocation5 + $0xe4] sm:$0xf]
    %v143 = vld [vmem:[#allocation5 + $0xe8] sm:$0xf]
    %v144 = vld [vmem:[#allocation5 + $0xec] sm:$0xf]
    %v145 = vld [vmem:[#allocation5 + $0xf0] sm:$0xf]
    %v146 = vld [vmem:[#allocation5 + $0xf4] sm:$0xf]
    %v147 = vld [vmem:[#allocation5 + $0xf8] sm:$0xf]
    %v148 = vld [vmem:[#allocation5 + $0xfc] sm:$0xf]
    %v149 = vlaneseq
    %v150 = vshrl.u32 %v149, 7
    %v151 = vsub.s32 0, %v150
    %v152 = vrot.slane %v83, %v151
    %v217 = vunpack.c.l.b16 %v85
    %v218 = vunpack.c.l.b16 %v86
    %v219 = vunpack.c.l.b16 %v87
    %v220 = vunpack.c.l.b16 %v88
    %v221 = vunpack.c.l.b16 %v89
    %v222 = vunpack.c.l.b16 %v90
    %v223 = vunpack.c.l.b16 %v91
    %v224 = vunpack.c.l.b16 %v92
    %v225 = vunpack.c.l.b16 %v93
    %v226 = vunpack.c.l.b16 %v94
    %v227 = vunpack.c.l.b16 %v95
    %v228 = vunpack.c.l.b16 %v96
    %v229 = vunpack.c.l.b16 %v97
    %v230 = vunpack.c.l.b16 %v98
    %v231 = vunpack.c.l.b16 %v99
    %v232 = vunpack.c.l.b16 %v100
    %v233 = vunpack.c.l.b16 %v101
    %v234 = vunpack.c.l.b16 %v102
    %v235 = vunpack.c.l.b16 %v103
    %v236 = vunpack.c.l.b16 %v104
    %v237 = vunpack.c.l.b16 %v105
    %v238 = vunpack.c.l.b16 %v106
    %v239 = vunpack.c.l.b16 %v107
    %v240 = vunpack.c.l.b16 %v108
    %v241 = vunpack.c.l.b16 %v109
    %v242 = vunpack.c.l.b16 %v110
    %v243 = vunpack.c.l.b16 %v111
    %v244 = vunpack.c.l.b16 %v112
    %v245 = vunpack.c.l.b16 %v113
    %v246 = vunpack.c.l.b16 %v114
    %v247 = vunpack.c.l.b16 %v115
    %v248 = vunpack.c.l.b16 %v116
    %v249 = vunpack.c.l.b16 %v117
    %v250 = vunpack.c.l.b16 %v118
    %v251 = vunpack.c.l.b16 %v119
    %v252 = vunpack.c.l.b16 %v120
    %v253 = vunpack.c.l.b16 %v121
    %v254 = vunpack.c.l.b16 %v122
    %v255 = vunpack.c.l.b16 %v123
    %v256 = vunpack.c.l.b16 %v124
    %v257 = vunpack.c.l.b16 %v125
    %v258 = vunpack.c.l.b16 %v126
    %v259 = vunpack.c.l.b16 %v127
    %v260 = vunpack.c.l.b16 %v128
    %v261 = vunpack.c.l.b16 %v129
    %v262 = vunpack.c.l.b16 %v130
    %v263 = vunpack.c.l.b16 %v131
    %v264 = vunpack.c.l.b16 %v132
    %v265 = vunpack.c.l.b16 %v133
    %v266 = vunpack.c.l.b16 %v134
    %v267 = vunpack.c.l.b16 %v135
    %v268 = vunpack.c.l.b16 %v136
    %v269 = vunpack.c.l.b16 %v137
    %v270 = vunpack.c.l.b16 %v138
    %v271 = vunpack.c.l.b16 %v139
    %v272 = vunpack.c.l.b16 %v140
    %v273 = vunpack.c.l.b16 %v141
    %v274 = vunpack.c.l.b16 %v142
    %v275 = vunpack.c.l.b16 %v143
    %v276 = vunpack.c.l.b16 %v144
    %v277 = vunpack.c.l.b16 %v145
    %v278 = vunpack.c.l.b16 %v146
    %v279 = vunpack.c.l.b16 %v147
    %v280 = vunpack.c.l.b16 %v148
    %v281 = vpack.c.b16 %v218, %v217
    %v282 = vpack.c.b16 %v220, %v219
    %v283 = vpack.c.b16 %v222, %v221
    %v284 = vpack.c.b16 %v224, %v223
    %v285 = vpack.c.b16 %v226, %v225
    %v286 = vpack.c.b16 %v228, %v227
    %v287 = vpack.c.b16 %v230, %v229
    %v288 = vpack.c.b16 %v232, %v231
    %v289 = vpack.c.b16 %v234, %v233
    %v290 = vpack.c.b16 %v236, %v235
    %v291 = vpack.c.b16 %v238, %v237
    %v292 = vpack.c.b16 %v240, %v239
    %v293 = vpack.c.b16 %v242, %v241
    %v294 = vpack.c.b16 %v244, %v243
    %v295 = vpack.c.b16 %v246, %v245
    %v296 = vpack.c.b16 %v248, %v247
    %v297 = vpack.c.b16 %v250, %v249
    %v298 = vpack.c.b16 %v252, %v251
    %v299 = vpack.c.b16 %v254, %v253
    %v300 = vpack.c.b16 %v256, %v255
    %v301 = vpack.c.b16 %v258, %v257
    %v302 = vpack.c.b16 %v260, %v259
    %v303 = vpack.c.b16 %v262, %v261
    %v304 = vpack.c.b16 %v264, %v263
    %v305 = vpack.c.b16 %v266, %v265
    %v306 = vpack.c.b16 %v268, %v267
    %v307 = vpack.c.b16 %v270, %v269
    %v308 = vpack.c.b16 %v272, %v271
    %v309 = vpack.c.b16 %v274, %v273
    %v310 = vpack.c.b16 %v276, %v275
    %v311 = vpack.c.b16 %v278, %v277
    %v312 = vpack.c.b16 %v280, %v279
    %345 = vmatprep.subr.bf16.mxu0 0
    %346 = vmatpush1.bf16.msra.mxu0 %v281
    %347 = vmatprep.subr.bf16.mxu0 0
    %348 = vmatpush1.bf16.msra.mxu0 %v282
    %349 = vmatprep.subr.bf16.mxu0 0
    %350 = vmatpush1.bf16.msra.mxu0 %v283
    %351 = vmatprep.subr.bf16.mxu0 0
    %352 = vmatpush1.bf16.msra.mxu0 %v284
    %353 = vmatprep.subr.bf16.mxu0 0
    %354 = vmatpush1.bf16.msra.mxu0 %v285
    %355 = vmatprep.subr.bf16.mxu0 0
    %356 = vmatpush1.bf16.msra.mxu0 %v286
    %357 = vmatprep.subr.bf16.mxu0 0
    %358 = vmatpush1.bf16.msra.mxu0 %v287
    %359 = vmatprep.subr.bf16.mxu0 0
    %360 = vmatpush1.bf16.msra.mxu0 %v288
    %361 = vmatprep.subr.bf16.mxu0 0
    %362 = vmatpush1.bf16.msra.mxu0 %v289
    %363 = vmatprep.subr.bf16.mxu0 0
    %364 = vmatpush1.bf16.msra.mxu0 %v290
    %365 = vmatprep.subr.bf16.mxu0 0
    %366 = vmatpush1.bf16.msra.mxu0 %v291
    %367 = vmatprep.subr.bf16.mxu0 0
    %368 = vmatpush1.bf16.msra.mxu0 %v292
    %369 = vmatprep.subr.bf16.mxu0 0
    %370 = vmatpush1.bf16.msra.mxu0 %v293
    %371 = vmatprep.subr.bf16.mxu0 0
    %372 = vmatpush1.bf16.msra.mxu0 %v294
    %373 = vmatprep.subr.bf16.mxu0 0
    %374 = vmatpush1.bf16.msra.mxu0 %v295
    %375 = vmatprep.subr.bf16.mxu0 0
    %376 = vmatpush1.bf16.msra.mxu0 %v296
    %377 = vmatprep.mubr.bf16.mxu0 %v80
    %378 = vmatmul.mubr.bf16.gmra.mrb[0].mxu0 %v79
    %v379 = vpop.f32.mrb[0].mxu0
    %v380 = vadd.f32 %v152, %v379
    %v381 = vpop.f32.mrb[0].mxu0
    %v382 = vpop.f32.mrb[0].mxu0
    %v383 = vpop.f32.mrb[0].mxu0
    %384 = vdwg.mxu0
    %385 = vmatprep.subr.bf16.mxu0 0
    %386 = vmatpush1.bf16.msra.mxu0 %v297
    %387 = vmatprep.subr.bf16.mxu0 0
    %388 = vmatpush1.bf16.msra.mxu0 %v298
    %389 = vmatprep.subr.bf16.mxu0 0
    %390 = vmatpush1.bf16.msra.mxu0 %v299
    %391 = vmatprep.subr.bf16.mxu0 0
    %392 = vmatpush1.bf16.msra.mxu0 %v300
    %393 = vmatprep.subr.bf16.mxu0 0
    %394 = vmatpush1.bf16.msra.mxu0 %v301
    %395 = vmatprep.subr.bf16.mxu0 0
    %396 = vmatpush1.bf16.msra.mxu0 %v302
    %397 = vmatprep.subr.bf16.mxu0 0
    %398 = vmatpush1.bf16.msra.mxu0 %v303
    %399 = vmatprep.subr.bf16.mxu0 0
    %400 = vmatpush1.bf16.msra.mxu0 %v304
    %401 = vmatprep.subr.bf16.mxu0 0
    %402 = vmatpush1.bf16.msra.mxu0 %v305
    %403 = vmatprep.subr.bf16.mxu0 0
    %404 = vmatpush1.bf16.msra.mxu0 %v306
    %405 = vmatprep.subr.bf16.mxu0 0
    %406 = vmatpush1.bf16.msra.mxu0 %v307
    %407 = vmatprep.subr.bf16.mxu0 0
    %408 = vmatpush1.bf16.msra.mxu0 %v308
    %409 = vmatprep.subr.bf16.mxu0 0
    %410 = vmatpush1.bf16.msra.mxu0 %v309
    %411 = vmatprep.subr.bf16.mxu0 0
    %412 = vmatpush1.bf16.msra.mxu0 %v310
    %413 = vmatprep.subr.bf16.mxu0 0
    %414 = vmatpush1.bf16.msra.mxu0 %v311
    %415 = vmatprep.subr.bf16.mxu0 0
    %416 = vmatpush1.bf16.msra.mxu0 %v312
    %417 = vmatprep.mubr.bf16.mxu0 %v82
    %418 = vmatmul.mubr.bf16.gmra.mrb[0].mxu0 %v81
    %v419 = vpop.f32.mrb[0].mxu0
    %v420 = vadd.f32 %v380, %v419
    %v421 = vpop.f32.mrb[0].mxu0
    %v422 = vpop.f32.mrb[0].mxu0
    %v423 = vpop.f32.mrb[0].mxu0
    %424 = vdwg.mxu0
    %v425 = vtanh.pop %v420
    %v426 = vpack.c.bf16 %v425, %v425
    %v427 = vld [vmem:[#allocation7] sm:$0xf]
    %v428 = vld [vmem:[#allocation7 + $0x4] sm:$0xf]
    %v429 = vld [vmem:[#allocation7 + $0x8] sm:$0xf]
    %v430 = vld [vmem:[#allocation7 + $0xc] sm:$0xf]
    %v431 = vld [vmem:[#allocation7 + $0x10] sm:$0xf]
    %v432 = vld [vmem:[#allocation7 + $0x14] sm:$0xf]
    %v433 = vld [vmem:[#allocation7 + $0x18] sm:$0xf]
    %v434 = vld [vmem:[#allocation7 + $0x1c] sm:$0xf]
    %v435 = vld [vmem:[#allocation7 + $0x20] sm:$0xf]
    %v436 = vld [vmem:[#allocation7 + $0x24] sm:$0xf]
    %v437 = vld [vmem:[#allocation7 + $0x28] sm:$0xf]
    %v438 = vld [vmem:[#allocation7 + $0x2c] sm:$0xf]
    %v439 = vld [vmem:[#allocation7 + $0x30] sm:$0xf]
    %v440 = vld [vmem:[#allocation7 + $0x34] sm:$0xf]
    %v441 = vld [vmem:[#allocation7 + $0x38] sm:$0xf]
    %v442 = vld [vmem:[#allocation7 + $0x3c] sm:$0xf]
    %v443 = vlaneseq
    %v444 = vshrl.u32 %v443, 7
    %v445 = vsub.s32 1, %v444
    %v446 = vrot.slane %v83, %v445
    %v463 = vunpack.c.l.b16 %v427
    %v464 = vunpack.c.l.b16 %v428
    %v465 = vunpack.c.l.b16 %v429
    %v466 = vunpack.c.l.b16 %v430
    %v467 = vunpack.c.l.b16 %v431
    %v468 = vunpack.c.l.b16 %v432
    %v469 = vunpack.c.l.b16 %v433
    %v470 = vunpack.c.l.b16 %v434
    %v471 = vunpack.c.l.b16 %v435
    %v472 = vunpack.c.l.b16 %v436
    %v473 = vunpack.c.l.b16 %v437
    %v474 = vunpack.c.l.b16 %v438
    %v475 = vunpack.c.l.b16 %v439
    %v476 = vunpack.c.l.b16 %v440
    %v477 = vunpack.c.l.b16 %v441
    %v478 = vunpack.c.l.b16 %v442
    %v479 = vpack.c.b16 %v464, %v463
    %v480 = vpack.c.b16 %v466, %v465
    %v481 = vpack.c.b16 %v468, %v467
    %v482 = vpack.c.b16 %v470, %v469
    %v483 = vpack.c.b16 %v472, %v471
    %v484 = vpack.c.b16 %v474, %v473
    %v485 = vpack.c.b16 %v476, %v475
    %v486 = vpack.c.b16 %v478, %v477
    %495 = vmatprep.subr.bf16.mxu0 0
    %496 = vmatpush1.bf16.msra.mxu0 %v479
    %497 = vmatprep.subr.bf16.mxu0 0
    %498 = vmatpush1.bf16.msra.mxu0 %v480
    %499 = vmatprep.subr.bf16.mxu0 0
    %500 = vmatpush1.bf16.msra.mxu0 %v481
    %501 = vmatprep.subr.bf16.mxu0 0
    %502 = vmatpush1.bf16.msra.mxu0 %v482
    %503 = vmatprep.subr.bf16.mxu0 0
    %504 = vmatpush1.bf16.msra.mxu0 %v483
    %505 = vmatprep.subr.bf16.mxu0 0
    %506 = vmatpush1.bf16.msra.mxu0 %v484
    %507 = vmatprep.subr.bf16.mxu0 0
    %508 = vmatpush1.bf16.msra.mxu0 %v485
    %509 = vmatprep.subr.bf16.mxu0 0
    %510 = vmatpush1.bf16.msra.mxu0 %v486
    %511 = vmatprep.subr.bf16.mxu0 0
    %512 = vmatpush1.bf16.msra.mxu0 0
    %513 = vmatprep.subr.bf16.mxu0 0
    %514 = vmatpush1.bf16.msra.mxu0 0
    %515 = vmatprep.subr.bf16.mxu0 0
    %516 = vmatpush1.bf16.msra.mxu0 0
    %517 = vmatprep.subr.bf16.mxu0 0
    %518 = vmatpush1.bf16.msra.mxu0 0
    %519 = vmatprep.subr.bf16.mxu0 0
    %520 = vmatpush1.bf16.msra.mxu0 0
    %521 = vmatprep.subr.bf16.mxu0 0
    %522 = vmatpush1.bf16.msra.mxu0 0
    %523 = vmatprep.subr.bf16.mxu0 0
    %524 = vmatpush1.bf16.msra.mxu0 0
    %525 = vmatprep.subr.bf16.mxu0 0
    %526 = vmatpush1.bf16.msra.mxu0 0
    %527 = vmatprep.mubr.bf16.mxu0 0
    %528 = vmatmul.mubr.bf16.gmra.mrb[0].mxu0 %v426
    %v529 = vpop.f32.mrb[0].mxu0
    %v530 = vadd.f32 %v446, %v529
    %v531 = vpop.f32.mrb[0].mxu0
    %v532 = vpop.f32.mrb[0].mxu0
    %v533 = vpop.f32.mrb[0].mxu0
    %534 = vdwg.mxu0
    %v535 = vtanh.pop %v530
    %v536 = vpack.c.bf16 %v535, %v535
    %v537 = vld [vmem:[#allocation8] sm:$0xff]
    %v538 = vld [vmem:[#allocation8 + $0x8] sm:$0xf]
    %v539 = vld [vmem:[#allocation8 + $0xc] sm:$0xff]
    %v540 = vld [vmem:[#allocation8 + $0x14] sm:$0xf]
    %v541 = vld [vmem:[#allocation8 + $0x18] sm:$0xff]
    %v542 = vld [vmem:[#allocation8 + $0x20] sm:$0xf]
    %v543 = vld [vmem:[#allocation8 + $0x24] sm:$0xff]
    %v544 = vld [vmem:[#allocation8 + $0x2c] sm:$0xf]
    %v545 = vld [vmem:[#allocation8 + $0x30] sm:$0xff]
    %v546 = vld [vmem:[#allocation8 + $0x38] sm:$0xf]
    %v547 = vld [vmem:[#allocation8 + $0x3c] sm:$0xff]
    %v548 = vld [vmem:[#allocation8 + $0x44] sm:$0xf]
    %v549 = vld [vmem:[#allocation8 + $0x48] sm:$0xff]
    %v550 = vld [vmem:[#allocation8 + $0x50] sm:$0xf]
    %v551 = vld [vmem:[#allocation8 + $0x54] sm:$0xff]
    %v552 = vld [vmem:[#allocation8 + $0x5c] sm:$0xf]
    %v553 = vld [vmem:[#allocation8 + $0x60] sm:$0xff]
    %v554 = vld [vmem:[#allocation8 + $0x68] sm:$0xf]
    %v555 = vld [vmem:[#allocation8 + $0x6c] sm:$0xff]
    %v556 = vld [vmem:[#allocation8 + $0x74] sm:$0xf]
    %v557 = vld [vmem:[#allocation8 + $0x78] sm:$0xff]
    %v558 = vld [vmem:[#allocation8 + $0x80] sm:$0xf]
    %v559 = vld [vmem:[#allocation8 + $0x84] sm:$0xff]
    %v560 = vld [vmem:[#allocation8 + $0x8c] sm:$0xf]
    %v561 = vld [vmem:[#allocation8 + $0x90] sm:$0xff]
    %v562 = vld [vmem:[#allocation8 + $0x98] sm:$0xf]
    %v563 = vld [vmem:[#allocation8 + $0x9c] sm:$0xff]
    %v564 = vld [vmem:[#allocation8 + $0xa4] sm:$0xf]
    %v565 = vld [vmem:[#allocation8 + $0xa8] sm:$0xff]
    %v566 = vld [vmem:[#allocation8 + $0xb0] sm:$0xf]
    %v567 = vld [vmem:[#allocation8 + $0xb4] sm:$0xff]
    %v568 = vld [vmem:[#allocation8 + $0xbc] sm:$0xf]
    %v571 = vlaneseq
    %v572 = vshrl.u32 %v571, 7
    %v573 = vsub.s32 2, %v572
    %v574 = vrot.slane %v83, %v573
    %v575 = vlaneseq
    %v576 = vshrl.u32 %v575, 7
    %v577 = vsub.s32 6, %v576
    %v578 = vrot.slane %v83, %v577
    %v579 = vlaneseq
    %v580 = vshrl.u32 %v579, 7
    %v581 = vsub.s32 2, %v580
    %v582 = vrot.slane %v84, %v581
    %v586 = vlaneseq
    %v587 = vshrl.u32 %v586, 7
    %v588 = vsub.s32 2, %v587
    %v589 = vrot.slane %v574, %v588
    %v590 = vlaneseq
    %v591 = vshrl.u32 %v590, 7
    %v592 = vsub.s32 2, %v591
    %v593 = vrot.slane %v578, %v592
    %v594 = vlaneseq
    %v595 = vshrl.u32 %v594, 7
    %v596 = vsub.s32 2, %v595
    %v597 = vrot.slane %v582, %v596
    %v630 = vunpack.c.l.b16 %v537
    %v631 = vunpack.c.h.b16 %v537
    %v632 = vunpack.c.l.b16 %v538
    %v633 = vunpack.c.l.b16 %v539
    %v634 = vunpack.c.h.b16 %v539
    %v635 = vunpack.c.l.b16 %v540
    %v636 = vunpack.c.l.b16 %v541
    %v637 = vunpack.c.h.b16 %v541
    %v638 = vunpack.c.l.b16 %v542
    %v639 = vunpack.c.l.b16 %v543
    %v640 = vunpack.c.h.b16 %v543
    %v641 = vunpack.c.l.b16 %v544
    %v642 = vunpack.c.l.b16 %v545
    %v643 = vunpack.c.h.b16 %v545
    %v644 = vunpack.c.l.b16 %v546
    %v645 = vunpack.c.l.b16 %v547
    %v646 = vunpack.c.h.b16 %v547
    %v647 = vunpack.c.l.b16 %v548
    %v648 = vunpack.c.l.b16 %v549
    %v649 = vunpack.c.h.b16 %v549
    %v650 = vunpack.c.l.b16 %v550
    %v651 = vunpack.c.l.b16 %v551
    %v652 = vunpack.c.h.b16 %v551
    %v653 = vunpack.c.l.b16 %v552
    %v654 = vunpack.c.l.b16 %v553
    %v655 = vunpack.c.h.b16 %v553
    %v656 = vunpack.c.l.b16 %v554
    %v657 = vunpack.c.l.b16 %v555
    %v658 = vunpack.c.h.b16 %v555
    %v659 = vunpack.c.l.b16 %v556
    %v660 = vunpack.c.l.b16 %v557
    %v661 = vunpack.c.h.b16 %v557
    %v662 = vunpack.c.l.b16 %v558
    %v663 = vunpack.c.l.b16 %v559
    %v664 = vunpack.c.h.b16 %v559
    %v665 = vunpack.c.l.b16 %v560
    %v666 = vunpack.c.l.b16 %v561
    %v667 = vunpack.c.h.b16 %v561
    %v668 = vunpack.c.l.b16 %v562
    %v669 = vunpack.c.l.b16 %v563
    %v670 = vunpack.c.h.b16 %v563
    %v671 = vunpack.c.l.b16 %v564
    %v672 = vunpack.c.l.b16 %v565
    %v673 = vunpack.c.h.b16 %v565
    %v674 = vunpack.c.l.b16 %v566
    %v675 = vunpack.c.l.b16 %v567
    %v676 = vunpack.c.h.b16 %v567
    %v677 = vunpack.c.l.b16 %v568
    %v678 = vpack.c.b16 %v633, %v630
    %v679 = vpack.c.b16 %v634, %v631
    %v680 = vpack.c.b16 %v635, %v632
    %v681 = vpack.c.b16 %v639, %v636
    %v682 = vpack.c.b16 %v640, %v637
    %v683 = vpack.c.b16 %v641, %v638
    %v684 = vpack.c.b16 %v645, %v642
    %v685 = vpack.c.b16 %v646, %v643
    %v686 = vpack.c.b16 %v647, %v644
    %v687 = vpack.c.b16 %v651, %v648
    %v688 = vpack.c.b16 %v652, %v649
    %v689 = vpack.c.b16 %v653, %v650
    %v690 = vpack.c.b16 %v657, %v654
    %v691 = vpack.c.b16 %v658, %v655
    %v692 = vpack.c.b16 %v659, %v656
    %v693 = vpack.c.b16 %v663, %v660
    %v694 = vpack.c.b16 %v664, %v661
    %v695 = vpack.c.b16 %v665, %v662
    %v696 = vpack.c.b16 %v669, %v666
    %v697 = vpack.c.b16 %v670, %v667
    %v698 = vpack.c.b16 %v671, %v668
    %v699 = vpack.c.b16 %v675, %v672
    %v700 = vpack.c.b16 %v676, %v673
    %v701 = vpack.c.b16 %v677, %v674
    %726 = vmatprep.subr.bf16.mxu0 %v679
    %727 = vmatpush1.bf16.msra.mxu0 %v678
    %728 = vmatprep.subr.bf16.mxu0 %v682
    %729 = vmatpush1.bf16.msra.mxu0 %v681
    %730 = vmatprep.subr.bf16.mxu0 %v685
    %731 = vmatpush1.bf16.msra.mxu0 %v684
    %732 = vmatprep.subr.bf16.mxu0 %v688
    %733 = vmatpush1.bf16.msra.mxu0 %v687
    %734 = vmatprep.subr.bf16.mxu0 %v691
    %735 = vmatpush1.bf16.msra.mxu0 %v690
    %736 = vmatprep.subr.bf16.mxu0 %v694
    %737 = vmatpush1.bf16.msra.mxu0 %v693
    %738 = vmatprep.subr.bf16.mxu0 %v697
    %739 = vmatpush1.bf16.msra.mxu0 %v696
    %740 = vmatprep.subr.bf16.mxu0 %v700
    %741 = vmatpush1.bf16.msra.mxu0 %v699
    %742 = vmatprep.subr.bf16.mxu0 0
    %743 = vmatpush1.bf16.msra.mxu0 0
    %744 = vmatprep.subr.bf16.mxu0 0
    %745 = vmatpush1.bf16.msra.mxu0 0
    %746 = vmatprep.subr.bf16.mxu0 0
    %747 = vmatpush1.bf16.msra.mxu0 0
    %748 = vmatprep.subr.bf16.mxu0 0
    %749 = vmatpush1.bf16.msra.mxu0 0
    %750 = vmatprep.subr.bf16.mxu0 0
    %751 = vmatpush1.bf16.msra.mxu0 0
    %752 = vmatprep.subr.bf16.mxu0 0
    %753 = vmatpush1.bf16.msra.mxu0 0
    %754 = vmatprep.subr.bf16.mxu0 0
    %755 = vmatpush1.bf16.msra.mxu0 0
    %756 = vmatprep.subr.bf16.mxu0 0
    %757 = vmatpush1.bf16.msra.mxu0 0
    %758 = vmatprep.mubr.bf16.mxu0 0
    %759 = vmatmul.mubr.bf16.gmra.mrb[0].mxu0 %v536
    %v760 = vpop.f32.mrb[0].mxu0
    %v761 = vadd.f32 %v589, %v760
    %v762 = vpop.f32.mrb[0].mxu0
    %v763 = vadd.f32 %v593, %v762
    %v764 = vpop.f32.mrb[0].mxu0
    %v765 = vpop.f32.mrb[0].mxu0
    %766 = vdwg.mxu0
    %767 = vmatprep.subr.bf16.mxu0 0
    %768 = vmatpush1.bf16.msra.mxu0 %v680
    %769 = vmatprep.subr.bf16.mxu0 0
    %770 = vmatpush1.bf16.msra.mxu0 %v683
    %771 = vmatprep.subr.bf16.mxu0 0
    %772 = vmatpush1.bf16.msra.mxu0 %v686
    %773 = vmatprep.subr.bf16.mxu0 0
    %774 = vmatpush1.bf16.msra.mxu0 %v689
    %775 = vmatprep.subr.bf16.mxu0 0
    %776 = vmatpush1.bf16.msra.mxu0 %v692
    %777 = vmatprep.subr.bf16.mxu0 0
    %778 = vmatpush1.bf16.msra.mxu0 %v695
    %779 = vmatprep.subr.bf16.mxu0 0
    %780 = vmatpush1.bf16.msra.mxu0 %v698
    %781 = vmatprep.subr.bf16.mxu0 0
    %782 = vmatpush1.bf16.msra.mxu0 %v701
    %783 = vmatprep.subr.bf16.mxu0 0
    %784 = vmatpush1.bf16.msra.mxu0 0
    %785 = vmatprep.subr.bf16.mxu0 0
    %786 = vmatpush1.bf16.msra.mxu0 0
    %787 = vmatprep.subr.bf16.mxu0 0
    %788 = vmatpush1.bf16.msra.mxu0 0
    %789 = vmatprep.subr.bf16.mxu0 0
    %790 = vmatpush1.bf16.msra.mxu0 0
    %791 = vmatprep.subr.bf16.mxu0 0
    %792 = vmatpush1.bf16.msra.mxu0 0
    %793 = vmatprep.subr.bf16.mxu0 0
    %794 = vmatpush1.bf16.msra.mxu0 0
    %795 = vmatprep.subr.bf16.mxu0 0
    %796 = vmatpush1.bf16.msra.mxu0 0
    %797 = vmatprep.subr.bf16.mxu0 0
    %798 = vmatpush1.bf16.msra.mxu0 0
    %799 = vmatprep.mubr.bf16.mxu0 0
    %800 = vmatmul.mubr.bf16.gmra.mrb[0].mxu0 %v536
    %v801 = vpop.f32.mrb[0].mxu0
    %v802 = vadd.f32 %v597, %v801
    %v803 = vpop.f32.mrb[0].mxu0
    %v804 = vpop.f32.mrb[0].mxu0
    %v805 = vpop.f32.mrb[0].mxu0
    %806 = vdwg.mxu0
    %v807 = vlaneseq
    %v808 = vand.u32 %v807, 127
    %v809 = vadd.s32 %v808, 128
    %v810 = vadd.s32 %v808, 256
    %vm811 = vcmp.lt.s32.totalorder %v808, 304
    %vm812 = vcmp.lt.s32.totalorder %v809, 304
    %vm813 = vcmp.lt.s32.totalorder %v810, 304
    %v814 = vtanh.pop %v761
    %v815 = vtanh.pop %v763
    %v816 = vtanh.pop %v802
    %v817 = vsel %vm811, %v814, %v761
    %v818 = vsel %vm812, %v815, %v763
    %v819 = vsel %vm813, %v816, %v802
    %820 = vst [vmem:[#allocation10] sm:$0xff] %v817
    %821 = vst [vmem:[#allocation10 + $0x8] sm:$0xff] %v818
    %822 = vst [vmem:[#allocation10 + $0x10] sm:$0xff] %v819
    // Predicated region
    $region38: #{tpu_custom_call.1} parent=1 // pred_check
      _
    $region39: #{tpu_custom_call.1} parent=1 // pred_check_branch
      %824 = sbr.rel (0) target = $region41
    $region40: #{tpu_custom_call.1} parent=1 // pred_region
      %s826 = ssub.s32 384, 384
      %827 = vsyncadd [#allocation4], %s826
      %s829 = sshll.u32 [#allocation10], 4
      %s830 = int_to_ptr.vmem [resolvable:$true] %s829
      %832 = dma.vmem_to_hbm [thread:$0]  %s830, 384, %s5, [#allocation4]
    $region41: #{tpu_custom_call.1} parent=1 // pred_fallthru
      _
    // Predicated region
    $region42: #{tpu_custom_call.1} parent=1 // pred_check
      _
    $region43: #{tpu_custom_call.1} parent=1 // pred_check_branch
      %834 = sbr.rel (0) target = $region45
    $region44: #{tpu_custom_call.1} parent=1 // pred_region
      %835 = dma.done [#allocation4], 384
    $region45: #{tpu_custom_call.1} parent=1 // pred_fallthru
      _
    %836 = vsyncpa [#allocation3], 1
    %837 = vsyncpa [#allocation6], 1
    %838 = vsyncpa [#allocation9], 1
    %839 = vsyncpa [#allocation4], 1

</llo_original>
